<compile_context>
chip_gen: v7x
topology: tpu7x:2x2x1
jax: 0.10.0
libtpu: 0.0.40
codegen_flags: <defaults>
</compile_context>

<pallas_src>
import functools

import jax
import jax.numpy as jnp
from jax.experimental import pallas as pl
from jax.experimental.pallas import tpu as pltpu

BN_EPS = 1e-5
LANE = 128


# --------------------------------------------------------------------------
# Kernel
# --------------------------------------------------------------------------
def _bn_relu(h, gamma, beta, inv_b):
    """Training-mode BatchNorm1d + ReLU, one-pass stats, gamma folded in."""
    s = jnp.sum(h, axis=0, keepdims=True)
    ss = jnp.sum(h * h, axis=0, keepdims=True)
    mean = s * inv_b
    var = ss * inv_b - mean * mean          # biased variance (PyTorch BN)
    scale = gamma * jax.lax.rsqrt(var + BN_EPS)   # rsqrt -> EUP slot
    return jnp.maximum((h - mean) * scale + beta, 0.0)


def encoder_kernel(x_ref, eps_ref, slab_ref, out_ref, *,
                   nf, h2, lat, off_w1, off_wmv1, off_wmv2, off_vec, inv_b):
    """Single grid-less program: 3 matmuls + 2 fused BN/ReLU + reparameterize.

    slab_ref is one lane-dense [R, 128] f32 block containing (sublane-stacked,
    8-aligned offsets):
        rows [off_w1   : off_w1+nf ]  -> W1      [F , 2H]  in lanes [:2H]
        rows [off_wmv1 : off_wmv1+2H] -> [Wm1|Wv1] [2H, 2H] in lanes [:2H]
        rows [off_wmv2 : off_wmv2+2H] -> blockdiag(Wm2,Wv2) [2H, 2L] in [:2L]
        rows [off_vec  : off_vec+5 ]  -> g1, be1, [gm|gv], [bem|bev], [bm2|bv2]
    """
    l2 = 2 * lat
    x = x_ref[...].astype(jnp.float32)

    # Static slices of the packed slab (zero-cost views / cheap VMEM loads).
    w1 = slab_ref[off_w1:off_w1 + nf, :h2]
    wmv1 = slab_ref[off_wmv1:off_wmv1 + h2, :h2]
    wmv2 = slab_ref[off_wmv2:off_wmv2 + h2, :l2]
    g1 = slab_ref[off_vec + 0:off_vec + 1, :h2]
    be1 = slab_ref[off_vec + 1:off_vec + 2, :h2]
    gmv = slab_ref[off_vec + 2:off_vec + 3, :h2]
    bemv = slab_ref[off_vec + 3:off_vec + 4, :h2]
    bmv2 = slab_ref[off_vec + 4:off_vec + 5, :l2]

    # linears[0:3]: Linear (bias dropped; cancelled by BN mean) -> BN -> ReLU
    h1 = jnp.dot(x, w1, preferred_element_type=jnp.float32)
    temp = _bn_relu(h1, g1, be1, inv_b)

    # Fused get_mu / get_logvar stage 1: one [2H,2H] matmul -> [hm | hv]
    hmv = jnp.dot(temp, wmv1, preferred_element_type=jnp.float32)
    hmv = _bn_relu(hmv, gmv, bemv, inv_b)

    # Fused stage 2 (block-diagonal weight): one matmul -> [mu | logvar]
    mulv = jnp.dot(hmv, wmv2, preferred_element_type=jnp.float32) + bmv2
    mu = mulv[:, :lat]
    logvar = mulv[:, lat:]

    # Reparameterize: exp lands on the EUP slot (free alongside VPU work).
    z = mu + jnp.exp(0.5 * logvar) * eps_ref[...].astype(jnp.float32)

    # Lane-dense output buffer: full-width zero init, then two static slice
    # stores (no concatenate, no lane-shift, no masked writeback DMA).
    out_ref[...] = jnp.zeros_like(out_ref)
    out_ref[:, :l2] = mulv.astype(out_ref.dtype)          # [mu | logvar]
    out_ref[:, l2:l2 + lat] = z.astype(out_ref.dtype)     # z


# --------------------------------------------------------------------------
# One-time parameter fusion / packing (done at init / load time, NOT per call)
# --------------------------------------------------------------------------
def prepare_encoder_params(params):
    """Fuse and pack the Encoder parameters into one lane-dense VMEM slab."""
    nf, h2 = params["w1"].shape                 # num_features, 2*hidden_dims
    hid, lat = params["wm2"].shape              # hidden_dims, latent_dim
    l2 = 2 * lat

    def pad_lane(a):
        return jnp.pad(a, ((0, 0), (0, LANE - a.shape[1])))

    def pad_sub(a, m=8):
        return jnp.pad(a, ((0, (-a.shape[0]) % m), (0, 0)))

    # Fuse the two first-stage linears of get_mu / get_logvar.
    wmv1 = jnp.concatenate([params["wm1"], params["wv1"]], axis=1)      # [2H,2H]
    # Block-diagonal second-stage weight so one matmul yields [mu | logvar].
    wmv2 = jnp.zeros((h2, l2), jnp.float32)
    wmv2 = wmv2.at[:hid, :lat].set(params["wm2"])
    wmv2 = wmv2.at[hid:, lat:].set(params["wv2"])                       # [2H,2L]

    # Vector params (pre-BN biases b1/bm1/bv1 dropped: cancelled by BN mean).
    vec = jnp.concatenate(
        [
            pad_lane(params["g1"]),
            pad_lane(params["be1"]),
            pad_lane(jnp.concatenate([params["gm"], params["gv"]], axis=1)),
            pad_lane(jnp.concatenate([params["bem"], params["bev"]], axis=1)),
            pad_lane(jnp.concatenate([params["bm2"], params["bv2"]], axis=1)),
        ],
        axis=0,
    )                                                                   # [5,128]

    blocks = [pad_sub(pad_lane(params["w1"])),   # W1
              pad_sub(pad_lane(wmv1)),           # [Wm1 | Wv1]
              pad_sub(pad_lane(wmv2)),           # blockdiag(Wm2, Wv2)
              pad_sub(vec)]                      # vector rows

    offs, r = [], 0
    for blk in blocks:
        offs.append(r)
        r += blk.shape[0]
    slab = jnp.concatenate(blocks, axis=0)       # [R, 128], R multiple of 8

    return {
        "slab": slab,
        "nf": int(nf), "h2": int(h2), "lat": int(lat),
        "off_w1": offs[0], "off_wmv1": offs[1],
        "off_wmv2": offs[2], "off_vec": offs[3],
    }


# --------------------------------------------------------------------------
# Forward wrapper (single Pallas program, 3 input DMAs, 1 lane-dense output)
# --------------------------------------------------------------------------
def encoder_forward(x, eps, fused):
    batch, nf = x.shape
    h2, lat = fused["h2"], fused["lat"]
    l2 = 2 * lat
    out_w = ((3 * lat + LANE - 1) // LANE) * LANE   # lane-dense output width

    kernel = functools.partial(
        encoder_kernel,
        nf=fused["nf"], h2=h2, lat=lat,
        off_w1=fused["off_w1"], off_wmv1=fused["off_wmv1"],
        off_wmv2=fused["off_wmv2"], off_vec=fused["off_vec"],
        inv_b=1.0 / batch,
    )

    vmem = pl.BlockSpec(memory_space=pltpu.MemorySpace.VMEM)
    inputs = (x, eps, fused["slab"])

    flops = 2 * batch * (nf * h2 + h2 * h2 + h2 * l2)
    bytes_accessed = 4 * (sum(int(a.size) for a in inputs) + batch * out_w)
    cost = pl.CostEstimate(
        flops=flops,
        transcendentals=batch * lat + 3 * h2,   # exp + two BN rsqrt passes
        bytes_accessed=bytes_accessed,
    )

    packed = pl.pallas_call(
        kernel,
        out_shape=jax.ShapeDtypeStruct((batch, out_w), jnp.float32),
        in_specs=[vmem] * len(inputs),
        out_specs=vmem,
        cost_estimate=cost,
    )(*inputs)

    mu = packed[:, :lat]
    logvar = packed[:, lat:l2]
    z = packed[:, l2:l2 + lat]
    return z, mu, logvar


# --------------------------------------------------------------------------
# Synthetic parameters + pure-JAX reference (faithful to the PyTorch module)
# --------------------------------------------------------------------------
def init_params(key, num_features, hidden_dims, latent_dim):
    """Deterministic synthetic parameter init (weights as [in, out])."""
    h2 = hidden_dims * 2
    ks = jax.random.split(key, 12)
    p = {}
    p["w1"] = 0.1 * jax.random.normal(ks[0], (num_features, h2), jnp.float32)
    p["b1"] = 0.1 * jax.random.normal(ks[1], (1, h2), jnp.float32)
    p["g1"] = 1.0 + 0.1 * jax.random.normal(ks[2], (1, h2), jnp.float32)
    p["be1"] = 0.1 * jax.random.normal(ks[3], (1, h2), jnp.float32)
    p["wm1"] = 0.1 * jax.random.normal(ks[4], (h2, hidden_dims), jnp.float32)
    p["bm1"] = 0.1 * jax.random.normal(ks[5], (1, hidden_dims), jnp.float32)
    p["gm"] = 1.0 + 0.1 * jax.random.normal(ks[6], (1, hidden_dims), jnp.float32)
    p["bem"] = 0.1 * jax.random.normal(ks[7], (1, hidden_dims), jnp.float32)
    p["wm2"] = 0.1 * jax.random.normal(ks[8], (hidden_dims, latent_dim), jnp.float32)
    p["bm2"] = 0.1 * jax.random.normal(ks[9], (1, latent_dim), jnp.float32)
    ks2 = jax.random.split(ks[10], 6)
    p["wv1"] = 0.1 * jax.random.normal(ks2[0], (h2, hidden_dims), jnp.float32)
    p["bv1"] = 0.1 * jax.random.normal(ks2[1], (1, hidden_dims), jnp.float32)
    p["gv"] = 1.0 + 0.1 * jax.random.normal(ks2[2], (1, hidden_dims), jnp.float32)
    p["bev"] = 0.1 * jax.random.normal(ks2[3], (1, hidden_dims), jnp.float32)
    p["wv2"] = 0.1 * jax.random.normal(ks2[4], (hidden_dims, latent_dim), jnp.float32)
    p["bv2"] = 0.1 * jax.random.normal(ks2[5], (1, latent_dim), jnp.float32)
    return p


def encoder_reference(x, eps, p):
    """Pure-JAX reference faithful to the PyTorch module (with biases)."""
    def lin(h, w, b):
        return h @ w + b

    def bn_relu(h, g, be):
        m = jnp.mean(h, axis=0, keepdims=True)
        v = jnp.mean((h - m) ** 2, axis=0, keepdims=True)
        return jnp.maximum((h - m) / jnp.sqrt(v + BN_EPS) * g + be, 0.0)

    temp = bn_relu(lin(x, p["w1"], p["b1"]), p["g1"], p["be1"])
    mu = lin(bn_relu(lin(temp, p["wm1"], p["bm1"]), p["gm"], p["bem"]),
             p["wm2"], p["bm2"])
    logvar = lin(bn_relu(lin(temp, p["wv1"], p["bv1"]), p["gv"], p["bev"]),
                 p["wv2"], p["bv2"])
    z = mu + jnp.exp(0.5 * logvar) * eps
    return z, mu, logvar


if __name__ == "__main__":
    num_features, hidden_dims, latent_dim, batch = 16, 32, 8, 8

    key = jax.random.PRNGKey(0)
    k_x, k_eps, k_p = jax.random.split(key, 3)

    x = jax.random.normal(k_x, (batch, num_features), jnp.float32)
    eps = jax.random.normal(k_eps, (batch, latent_dim), jnp.float32)
    params = init_params(k_p, num_features, hidden_dims, latent_dim)

    # One-time parameter fusion / packing (hoisted out of the forward path).
    fused = jax.tree_util.tree_map(
        lambda a: jax.block_until_ready(a) if isinstance(a, jax.Array) else a,
        prepare_encoder_params(params),
    )

    z, mu, logvar = jax.block_until_ready(encoder_forward(x, eps, fused))

    # Sanity check against the pure-JAX reference (bias-drop / gamma-fold /
    # one-pass BN stats are algebraically exact up to fp rounding).
    z_r, mu_r, lv_r = encoder_reference(x, eps, params)
    assert jnp.allclose(mu, mu_r, atol=5e-4), "mu mismatch"
    assert jnp.allclose(logvar, lv_r, atol=5e-4), "logvar mismatch"
    assert jnp.allclose(z, z_r, atol=5e-4), "z mismatch"
    assert z.shape == (batch, latent_dim)
    assert mu.shape == (batch, latent_dim)
    assert logvar.shape == (batch, latent_dim)

    print("KERNEL_OK")
</pallas_src>

<mosaic_0001>
module attributes {stable_mosaic.version = 11 : i64} {
  func.func @encoder_kernel(%arg0: memref<8x16xf32, #tpu.memory_space<vmem>>, %arg1: memref<8x8xf32, #tpu.memory_space<vmem>>, %arg2: memref<152x128xf32, #tpu.memory_space<vmem>>, %arg3: memref<8x128xf32, #tpu.memory_space<vmem>>) attributes {dimension_semantics = [], scalar_prefetch = 0 : i64, scratch_operands = 0 : i64, tpu.core_type = #tpu.core_type<tc>} {
    %c0 = arith.constant 0 : index
    %c0_0 = arith.constant 0 : index
    %0 = vector.load %arg0[%c0, %c0_0] : memref<8x16xf32, #tpu.memory_space<vmem>>, vector<8x16xf32>
    %c0_1 = arith.constant 0 : index
    %c0_2 = arith.constant 0 : index
    %1 = vector.load %arg2[%c0_1, %c0_2] : memref<152x128xf32, #tpu.memory_space<vmem>>, vector<16x64xf32>
    %c16 = arith.constant 16 : index
    %c0_3 = arith.constant 0 : index
    %2 = vector.load %arg2[%c16, %c0_3] : memref<152x128xf32, #tpu.memory_space<vmem>>, vector<64x64xf32>
    %c80 = arith.constant 80 : index
    %c0_4 = arith.constant 0 : index
    %3 = vector.load %arg2[%c80, %c0_4] : memref<152x128xf32, #tpu.memory_space<vmem>>, vector<64x16xf32>
    %c144 = arith.constant 144 : index
    %c0_5 = arith.constant 0 : index
    %4 = vector.load %arg2[%c144, %c0_5] : memref<152x128xf32, #tpu.memory_space<vmem>>, vector<1x64xf32>
    %c145 = arith.constant 145 : index
    %c0_6 = arith.constant 0 : index
    %5 = vector.load %arg2[%c145, %c0_6] : memref<152x128xf32, #tpu.memory_space<vmem>>, vector<1x64xf32>
    %c146 = arith.constant 146 : index
    %c0_7 = arith.constant 0 : index
    %6 = vector.load %arg2[%c146, %c0_7] : memref<152x128xf32, #tpu.memory_space<vmem>>, vector<1x64xf32>
    %c147 = arith.constant 147 : index
    %c0_8 = arith.constant 0 : index
    %7 = vector.load %arg2[%c147, %c0_8] : memref<152x128xf32, #tpu.memory_space<vmem>>, vector<1x64xf32>
    %c148 = arith.constant 148 : index
    %c0_9 = arith.constant 0 : index
    %8 = vector.load %arg2[%c148, %c0_9] : memref<152x128xf32, #tpu.memory_space<vmem>>, vector<1x16xf32>
    %cst = arith.constant dense<0.000000e+00> : vector<8x64xf32>
    %9 = tpu.matmul %0, %1, %cst {dimension_numbers = #tpu.dot_dimension_numbers<[1], [0], [0], [1], [0, 0, 1, 1], [], []>} : vector<8x16xf32>, vector<16x64xf32>, vector<8x64xf32> -> vector<8x64xf32>
    %cst_10 = arith.constant dense<0.000000e+00> : vector<64xf32>
    %10 = vector.multi_reduction <add>, %9, %cst_10 [0] : vector<8x64xf32> to vector<64xf32>
    %11 = vector.shape_cast %10 : vector<64xf32> to vector<1x64xf32>
    %12 = arith.mulf %9, %9 : vector<8x64xf32>
    %cst_11 = arith.constant dense<0.000000e+00> : vector<64xf32>
    %13 = vector.multi_reduction <add>, %12, %cst_11 [0] : vector<8x64xf32> to vector<64xf32>
    %14 = vector.shape_cast %13 : vector<64xf32> to vector<1x64xf32>
    %cst_12 = arith.constant 1.250000e-01 : f32
    %15 = vector.broadcast %cst_12 : f32 to vector<1x64xf32>
    %16 = arith.mulf %11, %15 : vector<1x64xf32>
    %cst_13 = arith.constant 1.250000e-01 : f32
    %17 = vector.broadcast %cst_13 : f32 to vector<1x64xf32>
    %18 = arith.mulf %14, %17 : vector<1x64xf32>
    %19 = arith.mulf %16, %16 : vector<1x64xf32>
    %20 = arith.subf %18, %19 : vector<1x64xf32>
    %cst_14 = arith.constant 9.99999974E-6 : f32
    %21 = vector.broadcast %cst_14 : f32 to vector<1x64xf32>
    %22 = arith.addf %20, %21 : vector<1x64xf32>
    %23 = math.rsqrt %22 : vector<1x64xf32>
    %24 = arith.mulf %4, %23 : vector<1x64xf32>
    %25 = vector.broadcast %16 : vector<1x64xf32> to vector<8x64xf32>
    %26 = arith.subf %9, %25 : vector<8x64xf32>
    %27 = vector.broadcast %24 : vector<1x64xf32> to vector<8x64xf32>
    %28 = arith.mulf %26, %27 : vector<8x64xf32>
    %29 = vector.broadcast %5 : vector<1x64xf32> to vector<8x64xf32>
    %30 = arith.addf %28, %29 : vector<8x64xf32>
    %cst_15 = arith.constant 0.000000e+00 : f32
    %31 = vector.broadcast %cst_15 : f32 to vector<8x64xf32>
    %32 = arith.maximumf %30, %31 : vector<8x64xf32>
    %cst_16 = arith.constant dense<0.000000e+00> : vector<8x64xf32>
    %33 = tpu.matmul %32, %2, %cst_16 {dimension_numbers = #tpu.dot_dimension_numbers<[1], [0], [0], [1], [0, 0, 1, 1], [], []>} : vector<8x64xf32>, vector<64x64xf32>, vector<8x64xf32> -> vector<8x64xf32>
    %cst_17 = arith.constant dense<0.000000e+00> : vector<64xf32>
    %34 = vector.multi_reduction <add>, %33, %cst_17 [0] : vector<8x64xf32> to vector<64xf32>
    %35 = vector.shape_cast %34 : vector<64xf32> to vector<1x64xf32>
    %36 = arith.mulf %33, %33 : vector<8x64xf32>
    %cst_18 = arith.constant dense<0.000000e+00> : vector<64xf32>
    %37 = vector.multi_reduction <add>, %36, %cst_18 [0] : vector<8x64xf32> to vector<64xf32>
    %38 = vector.shape_cast %37 : vector<64xf32> to vector<1x64xf32>
    %cst_19 = arith.constant 1.250000e-01 : f32
    %39 = vector.broadcast %cst_19 : f32 to vector<1x64xf32>
    %40 = arith.mulf %35, %39 : vector<1x64xf32>
    %cst_20 = arith.constant 1.250000e-01 : f32
    %41 = vector.broadcast %cst_20 : f32 to vector<1x64xf32>
    %42 = arith.mulf %38, %41 : vector<1x64xf32>
    %43 = arith.mulf %40, %40 : vector<1x64xf32>
    %44 = arith.subf %42, %43 : vector<1x64xf32>
    %cst_21 = arith.constant 9.99999974E-6 : f32
    %45 = vector.broadcast %cst_21 : f32 to vector<1x64xf32>
    %46 = arith.addf %44, %45 : vector<1x64xf32>
    %47 = math.rsqrt %46 : vector<1x64xf32>
    %48 = arith.mulf %6, %47 : vector<1x64xf32>
    %49 = vector.broadcast %40 : vector<1x64xf32> to vector<8x64xf32>
    %50 = arith.subf %33, %49 : vector<8x64xf32>
    %51 = vector.broadcast %48 : vector<1x64xf32> to vector<8x64xf32>
    %52 = arith.mulf %50, %51 : vector<8x64xf32>
    %53 = vector.broadcast %7 : vector<1x64xf32> to vector<8x64xf32>
    %54 = arith.addf %52, %53 : vector<8x64xf32>
    %cst_22 = arith.constant 0.000000e+00 : f32
    %55 = vector.broadcast %cst_22 : f32 to vector<8x64xf32>
    %56 = arith.maximumf %54, %55 : vector<8x64xf32>
    %cst_23 = arith.constant dense<0.000000e+00> : vector<8x16xf32>
    %57 = tpu.matmul %56, %3, %cst_23 {dimension_numbers = #tpu.dot_dimension_numbers<[1], [0], [0], [1], [0, 0, 1, 1], [], []>} : vector<8x64xf32>, vector<64x16xf32>, vector<8x16xf32> -> vector<8x16xf32>
    %58 = vector.broadcast %8 : vector<1x16xf32> to vector<8x16xf32>
    %59 = arith.addf %57, %58 : vector<8x16xf32>
    %60 = vector.extract_strided_slice %59 {offsets = [0, 0], sizes = [8, 8], strides = [1, 1]} : vector<8x16xf32> to vector<8x8xf32>
    %61 = vector.extract_strided_slice %59 {offsets = [0, 8], sizes = [8, 8], strides = [1, 1]} : vector<8x16xf32> to vector<8x8xf32>
    %cst_24 = arith.constant 5.000000e-01 : f32
    %62 = vector.broadcast %cst_24 : f32 to vector<8x8xf32>
    %63 = arith.mulf %62, %61 : vector<8x8xf32>
    %64 = math.exp %63 : vector<8x8xf32>
    %c0_25 = arith.constant 0 : index
    %c0_26 = arith.constant 0 : index
    %65 = vector.load %arg1[%c0_25, %c0_26] : memref<8x8xf32, #tpu.memory_space<vmem>>, vector<8x8xf32>
    %66 = arith.mulf %64, %65 : vector<8x8xf32>
    %67 = arith.addf %60, %66 : vector<8x8xf32>
    %cst_27 = arith.constant 0.000000e+00 : f32
    %68 = vector.broadcast %cst_27 : f32 to vector<8x128xf32>
    %c0_28 = arith.constant 0 : index
    %c0_29 = arith.constant 0 : index
    %69 = vector.load %arg3[%c0_28, %c0_29] : memref<8x128xf32, #tpu.memory_space<vmem>>, vector<8x128xf32>
    tpu.vector_store %arg3[%c0_28, %c0_29], %68 {strides = array<i32>} : memref<8x128xf32, #tpu.memory_space<vmem>>, vector<8x128xf32>,
    %c0_30 = arith.constant 0 : index
    %c0_31 = arith.constant 0 : index
    %70 = vector.load %arg3[%c0_30, %c0_31] : memref<8x128xf32, #tpu.memory_space<vmem>>, vector<8x16xf32>
    tpu.vector_store %arg3[%c0_30, %c0_31], %59 {strides = array<i32>} : memref<8x128xf32, #tpu.memory_space<vmem>>, vector<8x16xf32>,
    %c0_32 = arith.constant 0 : index
    %c16_33 = arith.constant 16 : index
    %71 = vector.load %arg3[%c0_32, %c16_33] : memref<8x128xf32, #tpu.memory_space<vmem>>, vector<8x8xf32>
    tpu.vector_store %arg3[%c0_32, %c16_33], %67 {strides = array<i32>} : memref<8x128xf32, #tpu.memory_space<vmem>>, vector<8x8xf32>,
    return
  }
}

</mosaic_0001>

<llo_original>
// kernel: tpu_custom_call.1
$region0: #{tpu_custom_call.1}
  #allocation0 [shape = 'u32[]', space=smem, size = 0x4, offset = 0x4, fixed_abs, tag = 'smem constant byte address 0x4 - core index']
  #allocation1 [shape = 'u32[144,128]{1,0:T(1,128)}', space=vmem, size = 0x12000, scoped, tag = 'internal scratch']
  %s0 = inlined_call_operand.hbm [shape: f32[8,16], index: 0, kind: input, shape index: {}]
  %s1 = inlined_call_operand.hbm [shape: f32[8,8], index: 1, kind: input, shape index: {}]
  %s2 = inlined_call_operand.hbm [shape: f32[152,128], index: 2, kind: input, shape index: {}]
  %s3 = inlined_call_operand.hbm [shape: f32[8,128], index: 3, kind: output, shape index: {}]
  %s4 = sld [smem:[#allocation0]]
  $region34: #{tpu_custom_call.1} parent=0
    _
  %s6 = ssub.s32 1, %s4
  %s7 = scalar_select 0, %s6, %s4
  $region1: #{tpu_custom_call.1} parent=0
    #allocation2 [shape = 'u8[4096]{0}', space=vmem, size = 0x1000, scoped, tag = 'input window, operand 0, single buffered']
    #allocation3 [shape = 's32[1]{0}', space=sflag, size = 0x4, scoped, tag = 'scoped memory for tpu_custom_call.1']
    #allocation4 [shape = 's32[1]{0}', space=sflag, size = 0x4, scoped, tag = 'scoped memory for tpu_custom_call.1']
    #allocation5 [shape = 'u8[4096]{0}', space=vmem, size = 0x1000, scoped, tag = 'input window, operand 1, single buffered']
    #allocation6 [shape = 's32[1]{0}', space=sflag, size = 0x4, scoped, tag = 'scoped memory for tpu_custom_call.1']
    #allocation7 [shape = 'u8[77824]{0}', space=vmem, size = 0x13000, scoped, tag = 'input window, operand 2, single buffered']
    #allocation8 [shape = 'u8[4096]{0}', space=vmem, size = 0x1000, scoped, tag = 'output window, operand 0, single buffered']
    %8 = vsyncpa [#allocation3], 0
    %9 = vsyncpa [#allocation6], 0
    %10 = vsyncpa [#allocation4], 0
    // Predicated region
    $region2: #{tpu_custom_call.1} parent=1 // pred_check
      _
    $region3: #{tpu_custom_call.1} parent=1 // pred_check_branch
      %12 = sbr.rel (0) target = $region5
    $region4: #{tpu_custom_call.1} parent=1 // pred_region
      %s14 = ssub.s32 128, 128
      %15 = vsyncadd [#allocation3], %s14
      %s17 = sshll.u32 [#allocation2], 4
      %s18 = int_to_ptr.vmem [resolvable:$true] %s17
      %20 = dma.hbm_to_vmem [thread:$0]  %s0, 128, %s18, [#allocation3]
    $region5: #{tpu_custom_call.1} parent=1 // pred_fallthru
      _
    // Predicated region
    $region6: #{tpu_custom_call.1} parent=1 // pred_check
      _
    $region7: #{tpu_custom_call.1} parent=1 // pred_check_branch
      %22 = sbr.rel (0) target = $region9
    $region8: #{tpu_custom_call.1} parent=1 // pred_region
      %s24 = ssub.s32 128, 128
      %25 = vsyncadd [#allocation6], %s24
      %s27 = sshll.u32 [#allocation5], 4
      %s28 = int_to_ptr.vmem [resolvable:$true] %s27
      %30 = dma.hbm_to_vmem [thread:$0]  %s1, 128, %s28, [#allocation6]
    $region9: #{tpu_custom_call.1} parent=1 // pred_fallthru
      _
    // Predicated region
    $region10: #{tpu_custom_call.1} parent=1 // pred_check
      _
    $region11: #{tpu_custom_call.1} parent=1 // pred_check_branch
      %32 = sbr.rel (0) target = $region13
    $region12: #{tpu_custom_call.1} parent=1 // pred_region
      %s34 = ssub.s32 2432, 2432
      %35 = vsyncadd [#allocation6], %s34
      %s36 = sshll.u32 [#allocation7], 4
      %s37 = int_to_ptr.vmem [resolvable:$true] %s36
      %42 = dma.hbm_to_vmem [thread:$0]  %s2, 2432, %s37, [#allocation6], 128, 128, 8
    $region13: #{tpu_custom_call.1} parent=1 // pred_fallthru
      _
    // Predicated region
    $region14: #{tpu_custom_call.1} parent=1 // pred_check
      _
    $region15: #{tpu_custom_call.1} parent=1 // pred_check_branch
      %44 = sbr.rel (0) target = $region17
    $region16: #{tpu_custom_call.1} parent=1 // pred_region
      %45 = dma.done [#allocation3], 128
    $region17: #{tpu_custom_call.1} parent=1 // pred_fallthru
      _
    // Predicated region
    $region18: #{tpu_custom_call.1} parent=1 // pred_check
      _
    $region19: #{tpu_custom_call.1} parent=1 // pred_check_branch
      %47 = sbr.rel (0) target = $region21
    $region20: #{tpu_custom_call.1} parent=1 // pred_region
      %48 = dma.done [#allocation6], 128
    $region21: #{tpu_custom_call.1} parent=1 // pred_fallthru
      _
    // Predicated region
    $region22: #{tpu_custom_call.1} parent=1 // pred_check
      _
    $region23: #{tpu_custom_call.1} parent=1 // pred_check_branch
      %50 = sbr.rel (0) target = $region25
    $region24: #{tpu_custom_call.1} parent=1 // pred_region
      %51 = dma.done [#allocation6], 2432
    $region25: #{tpu_custom_call.1} parent=1 // pred_fallthru
      _
    %v52 = vld [vmem:[#allocation2] sm:$0xff]
    %v53 = vld [vmem:[#allocation7] sm:$0xff]
    %v54 = vld [vmem:[#allocation7 + $0x8] sm:$0xff]
    %v55 = vld [vmem:[#allocation7 + $0x10] sm:$0xff]
    %v56 = vld [vmem:[#allocation7 + $0x18] sm:$0xff]
    %v57 = vld [vmem:[#allocation7 + $0x20] sm:$0xff]
    %v58 = vld [vmem:[#allocation7 + $0x28] sm:$0xff]
    %v59 = vld [vmem:[#allocation7 + $0x30] sm:$0xff]
    %v60 = vld [vmem:[#allocation7 + $0x38] sm:$0xff]
    %v61 = vld [vmem:[#allocation7 + $0x40] sm:$0xff]
    %v62 = vld [vmem:[#allocation7 + $0x48] sm:$0xff]
    %v63 = vld [vmem:[#allocation7 + $0x50] sm:$0xff]
    %v64 = vld [vmem:[#allocation7 + $0x58] sm:$0xff]
    %v65 = vld [vmem:[#allocation7 + $0x60] sm:$0xff]
    %v66 = vld [vmem:[#allocation7 + $0x68] sm:$0xff]
    %v67 = vld [vmem:[#allocation7 + $0x70] sm:$0xff]
    %v68 = vld [vmem:[#allocation7 + $0x78] sm:$0xff]
    %v69 = vld [vmem:[#allocation7 + $0x80] sm:$0xff]
    %v70 = vld [vmem:[#allocation7 + $0x88] sm:$0xff]
    %v71 = vld [vmem:[#allocation7 + $0x90] sm:$0x1]
    %v72 = vld [vmem:[#allocation7 + $0x91] sm:$0x1]
    %v73 = vld [vmem:[#allocation7 + $0x92] sm:$0x1]
    %v74 = vld [vmem:[#allocation7 + $0x93] sm:$0x1]
    %v75 = vld [vmem:[#allocation7 + $0x94] sm:$0x1]
    %vm76 = vcmask 130048
    %v78 = vsel %vm76, %v52, 0
    %80 = vmatprep.subr.mxu0 0.0
    %81 = vmatpush1.msra.mxu0 %v53
    %82 = vmatprep.subr.mxu0 0.0
    %83 = vmatpush1.msra.mxu0 %v54
    %84 = vmatprep.subr.mxu0 0.0
    %85 = vmatpush1.msra.mxu0 0.0
    %86 = vmatprep.subr.mxu0 0.0
    %87 = vmatpush1.msra.mxu0 0.0
    %88 = vmatprep.subr.mxu0 0.0
    %89 = vmatpush1.msra.mxu0 0.0
    %90 = vmatprep.subr.mxu0 0.0
    %91 = vmatpush1.msra.mxu0 0.0
    %92 = vmatprep.subr.mxu0 0.0
    %93 = vmatpush1.msra.mxu0 0.0
    %94 = vmatprep.subr.mxu0 0.0
    %95 = vmatpush1.msra.mxu0 0.0
    %96 = vmatprep.subr.mxu0 0.0
    %97 = vmatpush1.msra.mxu0 0.0
    %98 = vmatprep.subr.mxu0 0.0
    %99 = vmatpush1.msra.mxu0 0.0
    %100 = vmatprep.subr.mxu0 0.0
    %101 = vmatpush1.msra.mxu0 0.0
    %102 = vmatprep.subr.mxu0 0.0
    %103 = vmatpush1.msra.mxu0 0.0
    %104 = vmatprep.subr.mxu0 0.0
    %105 = vmatpush1.msra.mxu0 0.0
    %106 = vmatprep.subr.mxu0 0.0
    %107 = vmatpush1.msra.mxu0 0.0
    %108 = vmatprep.subr.mxu0 0.0
    %109 = vmatpush1.msra.mxu0 0.0
    %110 = vmatprep.subr.mxu0 0.0
    %111 = vmatpush1.msra.mxu0 0.0
    %112 = vmatprep.subr.mxu0 0.0
    %113 = vmatpush1.msra.mxu0 0.0
    %114 = vmatprep.subr.mxu0 0.0
    %115 = vmatpush1.msra.mxu0 0.0
    %116 = vmatprep.subr.mxu0 0.0
    %117 = vmatpush1.msra.mxu0 0.0
    %118 = vmatprep.subr.mxu0 0.0
    %119 = vmatpush1.msra.mxu0 0.0
    %120 = vmatprep.subr.mxu0 0.0
    %121 = vmatpush1.msra.mxu0 0.0
    %122 = vmatprep.subr.mxu0 0.0
    %123 = vmatpush1.msra.mxu0 0.0
    %124 = vmatprep.subr.mxu0 0.0
    %125 = vmatpush1.msra.mxu0 0.0
    %126 = vmatprep.subr.mxu0 0.0
    %127 = vmatpush1.msra.mxu0 0.0
    %128 = vmatprep.subr.mxu0 0.0
    %129 = vmatpush1.msra.mxu0 0.0
    %130 = vmatprep.subr.mxu0 0.0
    %131 = vmatpush1.msra.mxu0 0.0
    %132 = vmatprep.subr.mxu0 0.0
    %133 = vmatpush1.msra.mxu0 0.0
    %134 = vmatprep.subr.mxu0 0.0
    %135 = vmatpush1.msra.mxu0 0.0
    %136 = vmatprep.subr.mxu0 0.0
    %137 = vmatpush1.msra.mxu0 0.0
    %138 = vmatprep.subr.mxu0 0.0
    %139 = vmatpush1.msra.mxu0 0.0
    %140 = vmatprep.subr.mxu0 0.0
    %141 = vmatpush1.msra.mxu0 0.0
    %142 = vmatprep.subr.mxu0 0.0
    %143 = vmatpush1.msra.mxu0 0.0
    %144 = vmatprep.mubr.f32.mxu0 0.0
    %145 = vmatmul.mubr.f32.gmra.mrb[0].mxu0 %v78
    %v146 = vpop.f32.mrb[0].mxu0
    %v147 = vadd.f32 0.0, %v146
    %v148 = vpop.f32.mrb[0].mxu0
    %149 = vdwg.mxu0
    %vm150 = vcmask 523264
    %v151 = vsel %vm150, %v147, 0.0
    %v152 = vrot.slane %v151, 4
    %v153 = vadd.f32 %v151, %v152
    %v154 = vrot.slane %v153, 2
    %v155 = vadd.f32 %v153, %v154
    %v156 = vrot.slane %v155, 1
    %v157 = vadd.f32 %v155, %v156
    %v158 = vmul.f32 %v147, %v147
    %v159 = vsel %vm150, %v158, 0.0
    %v160 = vrot.slane %v159, 4
    %v161 = vadd.f32 %v159, %v160
    %v162 = vrot.slane %v161, 2
    %v163 = vadd.f32 %v161, %v162
    %v164 = vrot.slane %v163, 1
    %v165 = vadd.f32 %v163, %v164
    %v166 = vmul.f32 %v157, 0.125
    %v167 = vmul.f32 %v165, 0.125
    %v168 = vmul.f32 %v166, %v166
    %v169 = vsub.f32 %v167, %v168
    %v170 = vadd.f32 %v169, 1e-05
    %v171 = vrsqrt.pop %v170
    %v172 = vmul.f32 %v71, %v171
    %v173 = vsub.f32 %v147, %v166
    %v174 = vlaneseq
    %v175 = vshrl.u32 %v174, 7
    %v176 = vsub.s32 0, %v175
    %v177 = vrot.slane %v172, %v176
    %v178 = vmul.f32 %v173, %v177
    %v179 = vlaneseq
    %v180 = vshrl.u32 %v179, 7
    %v181 = vsub.s32 0, %v180
    %v182 = vrot.slane %v72, %v181
    %v183 = vadd.f32 %v178, %v182
    %v184 = vmax.f32 %v183, 0.0
    %v186 = vsel %vm150, %v184, 0
    %188 = vmatprep.subr.mxu0 0.0
    %189 = vmatpush1.msra.mxu0 %v55
    %190 = vmatprep.subr.mxu0 0.0
    %191 = vmatpush1.msra.mxu0 %v56
    %192 = vmatprep.subr.mxu0 0.0
    %193 = vmatpush1.msra.mxu0 %v57
    %194 = vmatprep.subr.mxu0 0.0
    %195 = vmatpush1.msra.mxu0 %v58
    %196 = vmatprep.subr.mxu0 0.0
    %197 = vmatpush1.msra.mxu0 %v59
    %198 = vmatprep.subr.mxu0 0.0
    %199 = vmatpush1.msra.mxu0 %v60
    %200 = vmatprep.subr.mxu0 0.0
    %201 = vmatpush1.msra.mxu0 %v61
    %202 = vmatprep.subr.mxu0 0.0
    %203 = vmatpush1.msra.mxu0 %v62
    %204 = vmatprep.subr.mxu0 0.0
    %205 = vmatpush1.msra.mxu0 0.0
    %206 = vmatprep.subr.mxu0 0.0
    %207 = vmatpush1.msra.mxu0 0.0
    %208 = vmatprep.subr.mxu0 0.0
    %209 = vmatpush1.msra.mxu0 0.0
    %210 = vmatprep.subr.mxu0 0.0
    %211 = vmatpush1.msra.mxu0 0.0
    %212 = vmatprep.subr.mxu0 0.0
    %213 = vmatpush1.msra.mxu0 0.0
    %214 = vmatprep.subr.mxu0 0.0
    %215 = vmatpush1.msra.mxu0 0.0
    %216 = vmatprep.subr.mxu0 0.0
    %217 = vmatpush1.msra.mxu0 0.0
    %218 = vmatprep.subr.mxu0 0.0
    %219 = vmatpush1.msra.mxu0 0.0
    %220 = vmatprep.subr.mxu0 0.0
    %221 = vmatpush1.msra.mxu0 0.0
    %222 = vmatprep.subr.mxu0 0.0
    %223 = vmatpush1.msra.mxu0 0.0
    %224 = vmatprep.subr.mxu0 0.0
    %225 = vmatpush1.msra.mxu0 0.0
    %226 = vmatprep.subr.mxu0 0.0
    %227 = vmatpush1.msra.mxu0 0.0
    %228 = vmatprep.subr.mxu0 0.0
    %229 = vmatpush1.msra.mxu0 0.0
    %230 = vmatprep.subr.mxu0 0.0
    %231 = vmatpush1.msra.mxu0 0.0
    %232 = vmatprep.subr.mxu0 0.0
    %233 = vmatpush1.msra.mxu0 0.0
    %234 = vmatprep.subr.mxu0 0.0
    %235 = vmatpush1.msra.mxu0 0.0
    %236 = vmatprep.subr.mxu0 0.0
    %237 = vmatpush1.msra.mxu0 0.0
    %238 = vmatprep.subr.mxu0 0.0
    %239 = vmatpush1.msra.mxu0 0.0
    %240 = vmatprep.subr.mxu0 0.0
    %241 = vmatpush1.msra.mxu0 0.0
    %242 = vmatprep.subr.mxu0 0.0
    %243 = vmatpush1.msra.mxu0 0.0
    %244 = vmatprep.subr.mxu0 0.0
    %245 = vmatpush1.msra.mxu0 0.0
    %246 = vmatprep.subr.mxu0 0.0
    %247 = vmatpush1.msra.mxu0 0.0
    %248 = vmatprep.subr.mxu0 0.0
    %249 = vmatpush1.msra.mxu0 0.0
    %250 = vmatprep.subr.mxu0 0.0
    %251 = vmatpush1.msra.mxu0 0.0
    %252 = vmatprep.mubr.f32.mxu0 0.0
    %253 = vmatmul.mubr.f32.gmra.mrb[0].mxu0 %v186
    %v254 = vpop.f32.mrb[0].mxu0
    %v255 = vadd.f32 0.0, %v254
    %v256 = vpop.f32.mrb[0].mxu0
    %257 = vdwg.mxu0
    %v258 = vsel %vm150, %v255, 0.0
    %v259 = vrot.slane %v258, 4
    %v260 = vadd.f32 %v258, %v259
    %v261 = vrot.slane %v260, 2
    %v262 = vadd.f32 %v260, %v261
    %v263 = vrot.slane %v262, 1
    %v264 = vadd.f32 %v262, %v263
    %v265 = vmul.f32 %v255, %v255
    %v266 = vsel %vm150, %v265, 0.0
    %v267 = vrot.slane %v266, 4
    %v268 = vadd.f32 %v266, %v267
    %v269 = vrot.slane %v268, 2
    %v270 = vadd.f32 %v268, %v269
    %v271 = vrot.slane %v270, 1
    %v272 = vadd.f32 %v270, %v271
    %v273 = vmul.f32 %v264, 0.125
    %v274 = vmul.f32 %v272, 0.125
    %v275 = vmul.f32 %v273, %v273
    %v276 = vsub.f32 %v274, %v275
    %v277 = vadd.f32 %v276, 1e-05
    %v278 = vrsqrt.pop %v277
    %v279 = vmul.f32 %v73, %v278
    %v280 = vsub.f32 %v255, %v273
    %v281 = vlaneseq
    %v282 = vshrl.u32 %v281, 7
    %v283 = vsub.s32 0, %v282
    %v284 = vrot.slane %v279, %v283
    %v285 = vmul.f32 %v280, %v284
    %v286 = vlaneseq
    %v287 = vshrl.u32 %v286, 7
    %v288 = vsub.s32 0, %v287
    %v289 = vrot.slane %v74, %v288
    %v290 = vadd.f32 %v285, %v289
    %v291 = vmax.f32 %v290, 0.0
    %v292 = vlaneseq
    %v293 = vshrl.u32 %v292, 7
    %v294 = vsub.s32 0, %v293
    %v295 = vrot.slane %v75, %v294
    %v297 = vsel %vm150, %v291, 0
    %299 = vmatprep.subr.mxu0 0.0
    %300 = vmatpush1.msra.mxu0 %v63
    %301 = vmatprep.subr.mxu0 0.0
    %302 = vmatpush1.msra.mxu0 %v64
    %303 = vmatprep.subr.mxu0 0.0
    %304 = vmatpush1.msra.mxu0 %v65
    %305 = vmatprep.subr.mxu0 0.0
    %306 = vmatpush1.msra.mxu0 %v66
    %307 = vmatprep.subr.mxu0 0.0
    %308 = vmatpush1.msra.mxu0 %v67
    %309 = vmatprep.subr.mxu0 0.0
    %310 = vmatpush1.msra.mxu0 %v68
    %311 = vmatprep.subr.mxu0 0.0
    %312 = vmatpush1.msra.mxu0 %v69
    %313 = vmatprep.subr.mxu0 0.0
    %314 = vmatpush1.msra.mxu0 %v70
    %315 = vmatprep.subr.mxu0 0.0
    %316 = vmatpush1.msra.mxu0 0.0
    %317 = vmatprep.subr.mxu0 0.0
    %318 = vmatpush1.msra.mxu0 0.0
    %319 = vmatprep.subr.mxu0 0.0
    %320 = vmatpush1.msra.mxu0 0.0
    %321 = vmatprep.subr.mxu0 0.0
    %322 = vmatpush1.msra.mxu0 0.0
    %323 = vmatprep.subr.mxu0 0.0
    %324 = vmatpush1.msra.mxu0 0.0
    %325 = vmatprep.subr.mxu0 0.0
    %326 = vmatpush1.msra.mxu0 0.0
    %327 = vmatprep.subr.mxu0 0.0
    %328 = vmatpush1.msra.mxu0 0.0
    %329 = vmatprep.subr.mxu0 0.0
    %330 = vmatpush1.msra.mxu0 0.0
    %331 = vmatprep.subr.mxu0 0.0
    %332 = vmatpush1.msra.mxu0 0.0
    %333 = vmatprep.subr.mxu0 0.0
    %334 = vmatpush1.msra.mxu0 0.0
    %335 = vmatprep.subr.mxu0 0.0
    %336 = vmatpush1.msra.mxu0 0.0
    %337 = vmatprep.subr.mxu0 0.0
    %338 = vmatpush1.msra.mxu0 0.0
    %339 = vmatprep.subr.mxu0 0.0
    %340 = vmatpush1.msra.mxu0 0.0
    %341 = vmatprep.subr.mxu0 0.0
    %342 = vmatpush1.msra.mxu0 0.0
    %343 = vmatprep.subr.mxu0 0.0
    %344 = vmatpush1.msra.mxu0 0.0
    %345 = vmatprep.subr.mxu0 0.0
    %346 = vmatpush1.msra.mxu0 0.0
    %347 = vmatprep.subr.mxu0 0.0
    %348 = vmatpush1.msra.mxu0 0.0
    %349 = vmatprep.subr.mxu0 0.0
    %350 = vmatpush1.msra.mxu0 0.0
    %351 = vmatprep.subr.mxu0 0.0
    %352 = vmatpush1.msra.mxu0 0.0
    %353 = vmatprep.subr.mxu0 0.0
    %354 = vmatpush1.msra.mxu0 0.0
    %355 = vmatprep.subr.mxu0 0.0
    %356 = vmatpush1.msra.mxu0 0.0
    %357 = vmatprep.subr.mxu0 0.0
    %358 = vmatpush1.msra.mxu0 0.0
    %359 = vmatprep.subr.mxu0 0.0
    %360 = vmatpush1.msra.mxu0 0.0
    %361 = vmatprep.subr.mxu0 0.0
    %362 = vmatpush1.msra.mxu0 0.0
    %363 = vmatprep.mubr.f32.mxu0 0.0
    %364 = vmatmul.mubr.f32.gmra.mrb[0].mxu0 %v297
    %v365 = vpop.f32.mrb[0].mxu0
    %v366 = vadd.f32 %v295, %v365
    %v367 = vpop.f32.mrb[0].mxu0
    %368 = vdwg.mxu0
    %v369 = vmul.f32 %v366, 0.5
    %v370 = vmul.f32 %v369, 1.442695
    %v371 = vpow.pop %v370
    %v372 = vld [vmem:[#allocation5] sm:$0xff]
    %374 = vrot.lane.b32.xlu0 %v372, 8
    %v375 = vpop.permute.xlu0 %374
    %v377 = vmul.f32 %v371, %v375
    %379 = vrot.lane.b32.xlu0 %v377, 120
    %v380 = vpop.permute.xlu0 %379
    %v382 = vadd.f32 %v366, %v380
    %383 = vst [vmem:[#allocation8] sm:$0xff] 0.0
    %384 = vst.msk [vmem:[#allocation8] sm:$0xff] %vm76, %v366
    %386 = vrot.lane.b32.xlu0 %v382, 16
    %v387 = vpop.permute.xlu0 %386
    %vm389 = vcmask 195712
    %390 = vst.msk [vmem:[#allocation8] sm:$0xff] %vm389, %v387
    // Predicated region
    $region26: #{tpu_custom_call.1} parent=1 // pred_check
      _
    $region27: #{tpu_custom_call.1} parent=1 // pred_check_branch
      %392 = sbr.rel (0) target = $region29
    $region28: #{tpu_custom_call.1} parent=1 // pred_region
      %s394 = ssub.s32 128, 128
      %395 = vsyncadd [#allocation4], %s394
      %s397 = sshll.u32 [#allocation8], 4
      %s398 = int_to_ptr.vmem [resolvable:$true] %s397
      %400 = dma.vmem_to_hbm [thread:$0]  %s398, 128, %s3, [#allocation4]
    $region29: #{tpu_custom_call.1} parent=1 // pred_fallthru
      _
    // Predicated region
    $region30: #{tpu_custom_call.1} parent=1 // pred_check
      _
    $region31: #{tpu_custom_call.1} parent=1 // pred_check_branch
      %402 = sbr.rel (0) target = $region33
    $region32: #{tpu_custom_call.1} parent=1 // pred_region
      %403 = dma.done [#allocation4], 128
    $region33: #{tpu_custom_call.1} parent=1 // pred_fallthru
      _
    %404 = vsyncpa [#allocation3], 1
    %405 = vsyncpa [#allocation6], 1
    %406 = vsyncpa [#allocation4], 1

</llo_original>
